<compile_context>
chip_gen: v5e
topology: v5e:2x2
jax: 0.10.0
libtpu: 0.0.40
codegen_flags: <defaults>
</compile_context>

<pallas_src>
import functools
import math

import jax
import jax.numpy as jnp
from jax.experimental import pallas as pl
from jax.experimental.pallas import tpu as pltpu


# ----------------------------------------------------------------------------
# helpers
# ----------------------------------------------------------------------------
def _round_up(x, m):
    return (x + m - 1) // m * m


def _tile(dim, tmax, align):
    """(padded_size, tile): tile <= tmax, tile % align == 0, padded % tile == 0,
    with minimal padding and minimal step count."""
    d = _round_up(dim, align)
    if d <= tmax:
        return d, d
    n = -(-d // tmax)
    t = _round_up(-(-d // n), align)
    return n * t, t


def _pad2(x, rows, cols):
    r, c = x.shape
    if r == rows and c == cols:
        return x
    return jnp.pad(x, ((0, rows - r), (0, cols - c)))


# ----------------------------------------------------------------------------
# Tiled matmul + bias (+ optional fused residual add) kernel
#   used for every Linear and every Conv (via im2col)
# ----------------------------------------------------------------------------
_TM_MAX, _TN_MAX, _TK_MAX = 128, 1024, 2048


def _mm_kernel(a_ref, b_ref, bias_ref, o_ref, acc_ref):
    @pl.when(pl.program_id(2) == 0)
    def _():
        acc_ref[...] = jnp.zeros_like(acc_ref)

    acc_ref[...] += jnp.dot(a_ref[...], b_ref[...],
                            preferred_element_type=jnp.float32)

    @pl.when(pl.program_id(2) == pl.num_programs(2) - 1)
    def _():
        o_ref[...] = (acc_ref[...] + bias_ref[...]).astype(o_ref.dtype)


def _mm_res_kernel(a_ref, b_ref, bias_ref, res_ref, o_ref, acc_ref):
    @pl.when(pl.program_id(2) == 0)
    def _():
        acc_ref[...] = jnp.zeros_like(acc_ref)

    acc_ref[...] += jnp.dot(a_ref[...], b_ref[...],
                            preferred_element_type=jnp.float32)

    @pl.when(pl.program_id(2) == pl.num_programs(2) - 1)
    def _():
        o_ref[...] = (acc_ref[...] + bias_ref[...] +
                      res_ref[...]).astype(o_ref.dtype)


@functools.lru_cache(maxsize=None)
def _build_matmul(Mp, Kp, Np, tm, tk, tn, with_res):
    in_specs = [
        pl.BlockSpec((tm, tk), lambda i, j, k: (i, k)),
        pl.BlockSpec((tk, tn), lambda i, j, k: (k, j)),
        pl.BlockSpec((1, tn), lambda i, j, k: (0, j)),
    ]
    kernel = _mm_kernel
    if with_res:
        in_specs.append(pl.BlockSpec((tm, tn), lambda i, j, k: (i, j)))
        kernel = _mm_res_kernel
    return pl.pallas_call(
        kernel,
        out_shape=jax.ShapeDtypeStruct((Mp, Np), jnp.float32),
        grid=(Mp // tm, Np // tn, Kp // tk),
        in_specs=in_specs,
        out_specs=pl.BlockSpec((tm, tn), lambda i, j, k: (i, j)),
        scratch_shapes=[pltpu.VMEM((tm, tn), jnp.float32)],
        compiler_params=pltpu.CompilerParams(
            dimension_semantics=("parallel", "parallel", "arbitrary")),
    )


def matmul_bias(a, p, residual=None):
    """a: (M, K); p: param dict with padded bf16 weight / f32 bias.
    Optional `residual` (M, N) is added in the final-k epilogue."""
    M, K = a.shape
    N, Kp, Np, tk, tn = p["N"], p["Kp"], p["Np"], p["tk"], p["tn"]
    Mp, tm = _tile(M, _TM_MAX, 16)
    a_p = _pad2(a.astype(jnp.bfloat16), Mp, Kp)
    args = [a_p, p["w"], p["b"]]
    if residual is not None:
        args.append(_pad2(residual.astype(jnp.float32), Mp, Np))
    out = _build_matmul(Mp, Kp, Np, tm, tk, tn, residual is not None)(*args)
    if (Mp, Np) != (M, N):
        out = out[:M, :N]
    return out


# ----------------------------------------------------------------------------
# GroupNorm (32 groups) + optional fused SiLU kernel (two-pass statistics)
# ----------------------------------------------------------------------------
def _groupnorm_kernel(x_ref, g_ref, gt_ref, gamma_ref, beta_ref, o_ref, *,
                      count, eps, silu):
    x = x_ref[0]                                         # (C, HW)
    ch_sum = jnp.sum(x, axis=1, keepdims=True)           # (C, 1)
    mean_g = jnp.dot(g_ref[...], ch_sum,
                     preferred_element_type=jnp.float32) / count
    mean_c = jnp.dot(gt_ref[...], mean_g, preferred_element_type=jnp.float32)
    d = x - mean_c
    ch_sq = jnp.sum(d * d, axis=1, keepdims=True)
    var_g = jnp.dot(g_ref[...], ch_sq,
                    preferred_element_type=jnp.float32) / count
    rstd_c = jnp.dot(gt_ref[...], jax.lax.rsqrt(var_g + eps),
                     preferred_element_type=jnp.float32)
    y = d * rstd_c * gamma_ref[...] + beta_ref[...]
    if silu:
        y = y * jax.nn.sigmoid(y)
    o_ref[0] = y


@functools.lru_cache(maxsize=None)
def _group_onehot(C):
    G = 32
    gid = jnp.arange(C) // (C // G)
    g = (jnp.arange(G)[:, None] == gid[None, :]).astype(jnp.float32)
    return g, g.T


@functools.lru_cache(maxsize=None)
def _build_group_norm(N, C, HW, eps, silu):
    G = 32
    kern = functools.partial(_groupnorm_kernel, count=float((C // G) * HW),
                             eps=eps, silu=silu)
    return pl.pallas_call(
        kern,
        out_shape=jax.ShapeDtypeStruct((N, C, HW), jnp.float32),
        grid=(N,),
        in_specs=[
            pl.BlockSpec((1, C, HW), lambda n: (n, 0, 0)),
            pl.BlockSpec((G, C), lambda n: (0, 0)),
            pl.BlockSpec((C, G), lambda n: (0, 0)),
            pl.BlockSpec((C, 1), lambda n: (0, 0)),
            pl.BlockSpec((C, 1), lambda n: (0, 0)),
        ],
        out_specs=pl.BlockSpec((1, C, HW), lambda n: (n, 0, 0)),
        compiler_params=pltpu.CompilerParams(dimension_semantics=("parallel",)),
    )


def group_norm(x, gamma, beta, eps, silu):
    """x: (N, C, H, W) NCHW -> same shape, 32-group GroupNorm (+optional SiLU)."""
    N, C, H, W = x.shape
    HW = H * W
    gmat, gmat_t = _group_onehot(C)
    out = _build_group_norm(N, C, HW, float(eps), bool(silu))(
        x.reshape(N, C, HW), gmat, gmat_t,
        gamma.reshape(C, 1), beta.reshape(C, 1))
    return out.reshape(N, C, H, W)


# ----------------------------------------------------------------------------
# LayerNorm kernel (normalizes over channels), row-tiled
# ----------------------------------------------------------------------------
def _layernorm_kernel(x_ref, g_ref, b_ref, o_ref, *, eps):
    x = x_ref[...]
    mean = jnp.mean(x, axis=-1, keepdims=True)
    xc = x - mean
    var = jnp.mean(xc * xc, axis=-1, keepdims=True)
    o_ref[...] = xc * jax.lax.rsqrt(var + eps) * g_ref[...] + b_ref[...]


@functools.lru_cache(maxsize=None)
def _build_layer_norm(Mp, tm, C, eps):
    return pl.pallas_call(
        functools.partial(_layernorm_kernel, eps=eps),
        out_shape=jax.ShapeDtypeStruct((Mp, C), jnp.float32),
        grid=(Mp // tm,),
        in_specs=[pl.BlockSpec((tm, C), lambda i: (i, 0)),
                  pl.BlockSpec((1, C), lambda i: (0, 0)),
                  pl.BlockSpec((1, C), lambda i: (0, 0))],
        out_specs=pl.BlockSpec((tm, C), lambda i: (i, 0)),
        compiler_params=pltpu.CompilerParams(dimension_semantics=("parallel",)),
    )


def layer_norm(x2d, gamma, beta, eps=1e-5):
    M, C = x2d.shape
    Mp, tm = _tile(M, 512, 8)
    out = _build_layer_norm(Mp, tm, C, float(eps))(
        _pad2(x2d, Mp, C), gamma.reshape(1, C), beta.reshape(1, C))
    return out[:M] if Mp != M else out


# ----------------------------------------------------------------------------
# GeGLU elementwise kernel: a * gelu(gate)  (exact erf gelu, like F.gelu)
# ----------------------------------------------------------------------------
def _geglu_kernel(a_ref, g_ref, o_ref):
    g = g_ref[...]
    gelu = 0.5 * g * (1.0 + jax.lax.erf(g * (1.0 / math.sqrt(2.0))))
    o_ref[...] = a_ref[...] * gelu


@functools.lru_cache(maxsize=None)
def _build_geglu(Mp, tm, D):
    return pl.pallas_call(
        _geglu_kernel,
        out_shape=jax.ShapeDtypeStruct((Mp, D), jnp.float32),
        grid=(Mp // tm,),
        in_specs=[pl.BlockSpec((tm, D), lambda i: (i, 0)),
                  pl.BlockSpec((tm, D), lambda i: (i, 0))],
        out_specs=pl.BlockSpec((tm, D), lambda i: (i, 0)),
        compiler_params=pltpu.CompilerParams(dimension_semantics=("parallel",)),
    )


def geglu(a, gate):
    M, D = a.shape
    Mp, tm = _tile(M, 256, 8)
    out = _build_geglu(Mp, tm, D)(_pad2(a, Mp, D), _pad2(gate, Mp, D))
    return out[:M] if Mp != M else out


# ----------------------------------------------------------------------------
# Attention core: softmax(q k^T / sqrt(dh)) v, all (batch*heads) in one step
# ----------------------------------------------------------------------------
def _attention_kernel(q_ref, k_ref, v_ref, o_ref, *, scale):
    s = jnp.einsum('bqd,bkd->bqk', q_ref[...], k_ref[...],
                   preferred_element_type=jnp.float32) * scale
    s = s - jnp.max(s, axis=-1, keepdims=True)
    p = jnp.exp(s)
    p = p / jnp.sum(p, axis=-1, keepdims=True)
    o_ref[...] = jnp.einsum('bqk,bkd->bqd', p.astype(jnp.bfloat16), v_ref[...],
                            preferred_element_type=jnp.float32)


@functools.lru_cache(maxsize=None)
def _build_attention(BH, Sq, Skv, Dp, scale):
    return pl.pallas_call(
        functools.partial(_attention_kernel, scale=scale),
        out_shape=jax.ShapeDtypeStruct((BH, Sq, Dp), jnp.float32),
        grid=(1,),
        in_specs=[pl.BlockSpec((BH, Sq, Dp), lambda i: (0, 0, 0)),
                  pl.BlockSpec((BH, Skv, Dp), lambda i: (0, 0, 0)),
                  pl.BlockSpec((BH, Skv, Dp), lambda i: (0, 0, 0))],
        out_specs=pl.BlockSpec((BH, Sq, Dp), lambda i: (0, 0, 0)),
        compiler_params=pltpu.CompilerParams(dimension_semantics=("arbitrary",)),
    )


def attention_core(q, k, v, d_head):
    """q: (BH, Sq, Dh), k/v: (BH, Skv, Dh) -> (BH, Sq, Dh).

    d_head < 128 is zero-padded to 128 lanes (exact for QK^T and PV; padded
    output columns are sliced off).
    TODO(synk): at real SD resolutions (hw >= 1024) switch to a flash-style
    online-softmax kernel with a KV grid axis; full-score blocks are fine here.
    """
    BH, Sq, Dh = q.shape
    Skv = k.shape[1]
    Dp = Dh if Dh >= 128 else 128

    def prep(t):
        t = t.astype(jnp.bfloat16)
        if Dp != Dh:
            t = jnp.pad(t, ((0, 0), (0, 0), (0, Dp - Dh)))
        return t

    out = _build_attention(BH, Sq, Skv, Dp, float(1.0 / math.sqrt(d_head)))(
        prep(q), prep(k), prep(v))
    return out[:, :, :Dh] if Dp != Dh else out


# ----------------------------------------------------------------------------
# Conv2d (NCHW) via bf16 im2col + Pallas matmul
# ----------------------------------------------------------------------------
def conv_fwd(p, x, stride=1):
    N_, Cin, H, W = x.shape
    k = p["k"]
    pad = 1 if k == 3 else 0
    xb = x.astype(jnp.bfloat16)                 # im2col built in bf16 (half HBM)
    if k == 1:
        col = xb.transpose(0, 2, 3, 1).reshape(N_ * H * W, Cin)
        Ho, Wo = H, W
    else:
        xp = jnp.pad(xb, ((0, 0), (0, 0), (pad, pad), (pad, pad)))
        Ho = (H + 2 * pad - k) // stride + 1
        Wo = (W + 2 * pad - k) // stride + 1
        patches = []
        for i in range(k):
            for j in range(k):
                patches.append(
                    xp[:, :, i:i + stride * Ho:stride, j:j + stride * Wo:stride])
        col = jnp.stack(patches, axis=2)         # (N, Cin, k*k, Ho, Wo)
        col = col.transpose(0, 3, 4, 1, 2).reshape(N_ * Ho * Wo, Cin * k * k)
    # TODO(synk): for large spatial sizes accumulate the k*k taps inside the
    # matmul kernel instead of materializing the 9x im2col tensor.
    out = matmul_bias(col, p)                    # (N*Ho*Wo, Cout)
    Cout = p["N"]
    return out.reshape(N_, Ho, Wo, Cout).transpose(0, 3, 1, 2)


# ----------------------------------------------------------------------------
# Parameter initialization (deterministic, synthetic); weights padded once.
# ----------------------------------------------------------------------------
class ParamGen:
    def __init__(self, seed=0):
        self.key = jax.random.PRNGKey(seed)
        self.count = 0

    def normal(self, shape, fan_in):
        self.count += 1
        k = jax.random.fold_in(self.key, self.count)
        return jax.random.normal(k, shape, jnp.float32) * (1.0 / math.sqrt(fan_in))


def _prep_matmul_params(w, b):
    K, N = w.shape
    Kp, tk = _tile(K, _TK_MAX, 128)
    Np, tn = _tile(N, _TN_MAX, 128)
    wp = _pad2(w.astype(jnp.bfloat16), Kp, Np)      # padded once, stored in bf16
    bp = jnp.zeros((1, Np), jnp.float32)
    if b is not None:
        bp = bp.at[0, :N].set(b.astype(jnp.float32))
    return {"w": wp, "b": bp, "K": K, "N": N, "Kp": Kp, "Np": Np,
            "tk": tk, "tn": tn}


def init_linear(pg, din, dout, bias=True):
    w = pg.normal((din, dout), din)
    b = pg.normal((dout,), din) if bias else None
    return _prep_matmul_params(w, b)


def init_conv(pg, cin, cout, k):
    fan_in = cin * k * k
    p = _prep_matmul_params(pg.normal((fan_in, cout), fan_in),
                            pg.normal((cout,), fan_in))
    p["k"] = k
    return p


def init_norm(c):
    return {"g": jnp.ones((c,), jnp.float32), "b": jnp.zeros((c,), jnp.float32)}


def init_residual_block(pg, cin, cout, n_time=1280):
    return {
        "gn_f": init_norm(cin),
        "conv_f": init_conv(pg, cin, cout, 3),
        "lin_t": init_linear(pg, n_time, cout, bias=True),
        "gn_m": init_norm(cout),
        "conv_m": init_conv(pg, cout, cout, 3),
        "skip": init_conv(pg, cin, cout, 1) if cin != cout else None,
    }


def init_attention_block(pg, n_head, n_embd, d_context=768):
    c = n_head * n_embd
    return {
        "n_head": n_head, "c": c,
        "gn": init_norm(c),
        "conv_in": init_conv(pg, c, c, 1),
        "ln1": init_norm(c),
        "attn1": {"in_proj": init_linear(pg, c, 3 * c, bias=False),
                  "out_proj": init_linear(pg, c, c, bias=True)},
        "ln2": init_norm(c),
        "attn2": {"q": init_linear(pg, c, c, bias=False),
                  "k": init_linear(pg, d_context, c, bias=False),
                  "v": init_linear(pg, d_context, c, bias=False),
                  "out_proj": init_linear(pg, c, c, bias=True)},
        "ln3": init_norm(c),
        "geglu1": init_linear(pg, c, 4 * c * 2, bias=True),
        "geglu2": init_linear(pg, 4 * c, c, bias=True),
        "conv_out": init_conv(pg, c, c, 1),
    }


def init_unet(pg):
    def res(ci, co): return ("res", init_residual_block(pg, ci, co))
    def attn(nh, ne): return ("attn", init_attention_block(pg, nh, ne))
    def conv(ci, co, s): return ("conv", {"p": init_conv(pg, ci, co, 3), "stride": s})
    def up(c): return ("up", {"conv": init_conv(pg, c, c, 3)})

    encoders = [
        [conv(4, 320, 1)],
        [res(320, 320), attn(8, 40)],
        [res(320, 320), attn(8, 40)],
        [conv(320, 320, 2)],
        [res(320, 640), attn(8, 80)],
        [res(640, 640), attn(8, 80)],
        [conv(640, 640, 2)],
        [res(640, 1280), attn(8, 160)],
        [res(1280, 1280), attn(8, 160)],
        [conv(1280, 1280, 2)],
        [res(1280, 1280)],
        [res(1280, 1280)],
    ]
    bottleneck = [res(1280, 1280), attn(8, 160), res(1280, 1280)]
    decoders = [
        [res(2560, 1280)],
        [res(2560, 1280)],
        [res(2560, 1280), up(1280)],
        [res(2560, 1280), attn(8, 160)],
        [res(2560, 1280), attn(8, 160)],
        [res(1920, 1280), attn(8, 160), up(1280)],
        [res(1920, 640), attn(8, 80)],
        [res(1280, 640), attn(8, 80)],
        [res(960, 640), attn(8, 80), up(640)],
        [res(960, 320), attn(8, 40)],
        [res(640, 320), attn(8, 40)],
        [res(640, 320), attn(8, 40)],
    ]
    return {"encoders": encoders, "bottleneck": bottleneck, "decoders": decoders}


# ----------------------------------------------------------------------------
# Forward-pass building blocks (JAX glue calling the Pallas kernels)
# ----------------------------------------------------------------------------
def residual_block_fwd(p, feature, time):
    residue = feature
    h = group_norm(feature, p["gn_f"]["g"], p["gn_f"]["b"], eps=1e-5, silu=True)
    h = conv_fwd(p["conv_f"], h)
    t = jax.nn.silu(time)                       # (1, 1280) - tiny, JAX glue
    t = matmul_bias(t, p["lin_t"])              # (1, cout)
    merged = h + t[:, :, None, None]
    merged = group_norm(merged, p["gn_m"]["g"], p["gn_m"]["b"], eps=1e-5, silu=True)
    merged = conv_fwd(p["conv_m"], merged)
    if p["skip"] is not None:
        residue = conv_fwd(p["skip"], residue)
    return merged + residue


def _split_heads(t, n, s, n_head, dh):
    return t.reshape(n, s, n_head, dh).transpose(0, 2, 1, 3).reshape(n * n_head, s, dh)


def _merge_heads(t, n, s, n_head, dh):
    return t.reshape(n, n_head, s, dh).transpose(0, 2, 1, 3).reshape(n * s, n_head * dh)


def self_attention_fwd(p, x2d, n, s, n_head, residual2d):
    c = x2d.shape[1]
    dh = c // n_head
    qkv = matmul_bias(x2d, p["in_proj"]).reshape(n, s, 3 * c)
    q, k, v = jnp.split(qkv, 3, axis=-1)
    o = attention_core(_split_heads(q, n, s, n_head, dh),
                       _split_heads(k, n, s, n_head, dh),
                       _split_heads(v, n, s, n_head, dh), dh)
    # residual add fused into the out-proj matmul epilogue
    return matmul_bias(_merge_heads(o, n, s, n_head, dh), p["out_proj"],
                       residual=residual2d)


def cross_attention_fwd(p, x2d, y, n, s, n_head, residual2d):
    c = x2d.shape[1]
    _, sy, dc = y.shape
    dh = c // n_head
    q = matmul_bias(x2d, p["q"]).reshape(n, s, c)
    k = matmul_bias(y.reshape(n * sy, dc), p["k"]).reshape(n, sy, c)
    v = matmul_bias(y.reshape(n * sy, dc), p["v"]).reshape(n, sy, c)
    o = attention_core(_split_heads(q, n, s, n_head, dh),
                       _split_heads(k, n, sy, n_head, dh),
                       _split_heads(v, n, sy, n_head, dh), dh)
    return matmul_bias(_merge_heads(o, n, s, n_head, dh), p["out_proj"],
                       residual=residual2d)


def attention_block_fwd(p, x, context):
    n_head, c = p["n_head"], p["c"]
    residue_long = x
    h = group_norm(x, p["gn"]["g"], p["gn"]["b"], eps=1e-6, silu=False)
    h = conv_fwd(p["conv_in"], h)
    n, cc, hh, ww = h.shape
    hw = hh * ww
    h2 = h.transpose(0, 2, 3, 1).reshape(n * hw, cc)        # (n*hw, c)

    hs = layer_norm(h2, p["ln1"]["g"], p["ln1"]["b"])
    h2 = self_attention_fwd(p["attn1"], hs, n, hw, n_head, residual2d=h2)

    hs = layer_norm(h2, p["ln2"]["g"], p["ln2"]["b"])
    h2 = cross_attention_fwd(p["attn2"], hs, context, n, hw, n_head, residual2d=h2)

    hs = layer_norm(h2, p["ln3"]["g"], p["ln3"]["b"])
    g1 = matmul_bias(hs, p["geglu1"])                       # (n*hw, 8c)
    hs = geglu(g1[:, :4 * cc], g1[:, 4 * cc:])
    h2 = matmul_bias(hs, p["geglu2"], residual=h2)          # fused residual add

    h = h2.reshape(n, hw, cc).transpose(0, 2, 1).reshape(n, cc, hh, ww)
    h = conv_fwd(p["conv_out"], h)
    return h + residue_long


def upsample_fwd(p, x):
    x = jnp.repeat(jnp.repeat(x, 2, axis=2), 2, axis=3)     # nearest 2x
    return conv_fwd(p["conv"], x)


def switch_sequential(layers, x, context, time):
    for kind, p in layers:
        if kind == "res":
            x = residual_block_fwd(p, x, time)
        elif kind == "attn":
            x = attention_block_fwd(p, x, context)
        elif kind == "conv":
            x = conv_fwd(p["p"], x, stride=p["stride"])
        elif kind == "up":
            x = upsample_fwd(p, x)
    return x


def unet_fwd(params, x, context, time):
    skips = []
    for layers in params["encoders"]:
        x = switch_sequential(layers, x, context, time)
        skips.append(x)
    x = switch_sequential(params["bottleneck"], x, context, time)
    for layers in params["decoders"]:
        x = jnp.concatenate([x, skips.pop()], axis=1)
        x = switch_sequential(layers, x, context, time)
    return x


# ----------------------------------------------------------------------------
if __name__ == "__main__":
    key = jax.random.PRNGKey(0)
    kx, kc, kt = jax.random.split(key, 3)

    # Small shapes consistent with the module (channel counts fixed by UNET).
    N, H, W = 1, 8, 8            # latent spatial must be divisible by 8 (3x stride-2)
    SEQ, D_CTX, N_TIME = 8, 768, 1280

    x = jax.random.normal(kx, (N, 4, H, W), jnp.float32)
    context = jax.random.normal(kc, (N, SEQ, D_CTX), jnp.float32)
    time = jax.random.normal(kt, (1, N_TIME), jnp.float32)

    pg = ParamGen(0)
    params = init_unet(pg)

    out = unet_fwd(params, x, context, time)
    out = jax.block_until_ready(out)

    assert out.shape == (N, 320, H, W), out.shape
    assert bool(jnp.all(jnp.isfinite(out)))
    print("KERNEL_OK")
</pallas_src>

<mosaic_0001>
module attributes {stable_mosaic.version = 11 : i64} {
  func.func @_mm_kernel(%arg0: i32, %arg1: i32, %arg2: i32, %arg3: memref<64x128xbf16, #tpu.memory_space<vmem>>, %arg4: memref<128x384xbf16, #tpu.memory_space<vmem>>, %arg5: memref<1x384xf32, #tpu.memory_space<vmem>>, %arg6: memref<64x384xf32, #tpu.memory_space<vmem>>, %arg7: memref<64x384xf32, #tpu.memory_space<vmem>>) attributes {dimension_semantics = [#tpu.dimension_semantics<parallel>, #tpu.dimension_semantics<parallel>, #tpu.dimension_semantics<arbitrary>], iteration_bounds = array<i64: 1, 1, 1>, scalar_prefetch = 0 : i64, scratch_operands = 1 : i64, tpu.core_type = #tpu.core_type<tc>, window_params = [{transform_indices = @transform_0, window_bounds = array<i64: 64, 128>}, {transform_indices = @transform_1, window_bounds = array<i64: 128, 384>}, {transform_indices = @transform_2, window_bounds = array<i64: 1, 384>}, {transform_indices = @transform_3, window_bounds = array<i64: 64, 384>}]} {
    %c0_i32 = arith.constant 0 : i32
    %0 = arith.cmpi eq, %arg2, %c0_i32 : i32
    %1 = arith.extui %0 : i1 to i32
    %c0_i32_0 = arith.constant 0 : i32
    %2 = arith.cmpi ne, %1, %c0_i32_0 : i32
    scf.if %2 {
      %cst_10 = arith.constant 0.000000e+00 : f32
      %12 = vector.broadcast %cst_10 : f32 to vector<64x384xf32>
      %c0_11 = arith.constant 0 : index
      %c0_12 = arith.constant 0 : index
      %13 = vector.load %arg7[%c0_11, %c0_12] : memref<64x384xf32, #tpu.memory_space<vmem>>, vector<64x384xf32>
      tpu.vector_store %arg7[%c0_11, %c0_12], %12 {strides = array<i32>} : memref<64x384xf32, #tpu.memory_space<vmem>>, vector<64x384xf32>,
    } else {
    }
    %c0 = arith.constant 0 : index
    %c0_1 = arith.constant 0 : index
    %3 = vector.load %arg7[%c0, %c0_1] : memref<64x384xf32, #tpu.memory_space<vmem>>, vector<64x384xf32>
    %c0_2 = arith.constant 0 : index
    %c0_3 = arith.constant 0 : index
    %4 = vector.load %arg3[%c0_2, %c0_3] : memref<64x128xbf16, #tpu.memory_space<vmem>>, vector<64x128xbf16>
    %c0_4 = arith.constant 0 : index
    %c0_5 = arith.constant 0 : index
    %5 = vector.load %arg4[%c0_4, %c0_5] : memref<128x384xbf16, #tpu.memory_space<vmem>>, vector<128x384xbf16>
    %cst = arith.constant dense<0.000000e+00> : vector<64x384xf32>
    %6 = tpu.matmul %4, %5, %cst {dimension_numbers = #tpu.dot_dimension_numbers<[1], [0], [0], [1], [0, 0, 1, 1], [], []>} : vector<64x128xbf16>, vector<128x384xbf16>, vector<64x384xf32> -> vector<64x384xf32>
    %7 = arith.addf %3, %6 : vector<64x384xf32>
    %c0_6 = arith.constant 0 : index
    %c0_7 = arith.constant 0 : index
    %8 = vector.load %arg7[%c0_6, %c0_7] : memref<64x384xf32, #tpu.memory_space<vmem>>, vector<64x384xf32>
    tpu.vector_store %arg7[%c0_6, %c0_7], %7 {strides = array<i32>} : memref<64x384xf32, #tpu.memory_space<vmem>>, vector<64x384xf32>,
    %c0_i32_8 = arith.constant 0 : i32
    %9 = arith.cmpi eq, %arg2, %c0_i32_8 : i32
    %10 = arith.extui %9 : i1 to i32
    %c0_i32_9 = arith.constant 0 : i32
    %11 = arith.cmpi ne, %10, %c0_i32_9 : i32
    scf.if %11 {
      %c0_10 = arith.constant 0 : index
      %c0_11 = arith.constant 0 : index
      %12 = vector.load %arg7[%c0_10, %c0_11] : memref<64x384xf32, #tpu.memory_space<vmem>>, vector<64x384xf32>
      %c0_12 = arith.constant 0 : index
      %c0_13 = arith.constant 0 : index
      %13 = vector.load %arg5[%c0_12, %c0_13] : memref<1x384xf32, #tpu.memory_space<vmem>>, vector<1x384xf32>
      %14 = vector.broadcast %13 : vector<1x384xf32> to vector<64x384xf32>
      %15 = arith.addf %12, %14 : vector<64x384xf32>
      %c0_14 = arith.constant 0 : index
      %c0_15 = arith.constant 0 : index
      %16 = vector.load %arg6[%c0_14, %c0_15] : memref<64x384xf32, #tpu.memory_space<vmem>>, vector<64x384xf32>
      tpu.vector_store %arg6[%c0_14, %c0_15], %15 {strides = array<i32>} : memref<64x384xf32, #tpu.memory_space<vmem>>, vector<64x384xf32>,
    } else {
    }
    return
  }
  func.func @transform_0(%arg0: i32, %arg1: i32, %arg2: i32) -> (i32, i32) {
    %c0_i32 = arith.constant 0 : i32
    return %arg0, %arg2 : i32, i32
  }
  func.func @transform_1(%arg0: i32, %arg1: i32, %arg2: i32) -> (i32, i32) {
    %c0_i32 = arith.constant 0 : i32
    return %arg2, %arg1 : i32, i32
  }
  func.func @transform_2(%arg0: i32, %arg1: i32, %arg2: i32) -> (i32, i32) {
    %c0_i32 = arith.constant 0 : i32
    %c0_i32_0 = arith.constant 0 : i32
    return %c0_i32, %arg1 : i32, i32
  }
  func.func @transform_3(%arg0: i32, %arg1: i32, %arg2: i32) -> (i32, i32) {
    %c0_i32 = arith.constant 0 : i32
    return %arg0, %arg1 : i32, i32
  }
}

</mosaic_0001>

<llo_original>
// kernel: tpu_custom_call.1
$region0: #{tpu_custom_call.1}
  #allocation0 [shape = 'u32[]', space=smem, size = 0x4, offset = 0x4, fixed_abs, tag = 'smem constant byte address 0x4 - core index']
  #allocation1 [shape = 'u32[72,128]{1,0:T(1,128)}', space=vmem, size = 0x9000, scoped, tag = 'internal scratch']
  #allocation2 [shape = 'f32[64,384]{1,0:T(8,128)}', space=vmem, size = 0x18000, scoped, tag = 'scratch operand']
  %s0 = inlined_call_operand.hbm [shape: bf16[64,128], index: 0, kind: input, shape index: {}]
  %s1 = inlined_call_operand.hbm [shape: bf16[128,384], index: 1, kind: input, shape index: {}]
  %s2 = inlined_call_operand.hbm [shape: f32[1,384], index: 2, kind: input, shape index: {}]
  %s3 = inlined_call_operand.hbm [shape: f32[64,384], index: 3, kind: output, shape index: {}]
  %s4 = sld [smem:[#allocation0]]
  $region42: #{tpu_custom_call.1} parent=0
    _
  %s6 = ssub.s32 1, %s4
  %s7 = scalar_select 0, %s6, %s4
  $region1: #{tpu_custom_call.1} parent=0
    #allocation3 [shape = 'u8[16384]{0}', space=vmem, size = 0x4000, scoped, tag = 'input window, operand 0, single buffered']
    #allocation4 [shape = 's32[1]{0}', space=sflag, size = 0x4, scoped, tag = 'scoped memory for tpu_custom_call.1']
    #allocation5 [shape = 's32[1]{0}', space=sflag, size = 0x4, scoped, tag = 'scoped memory for tpu_custom_call.1']
    #allocation6 [shape = 'u8[98304]{0}', space=vmem, size = 0x18000, scoped, tag = 'input window, operand 1, single buffered']
    #allocation7 [shape = 's32[1]{0}', space=sflag, size = 0x4, scoped, tag = 'scoped memory for tpu_custom_call.1']
    #allocation8 [shape = 'u8[1536]{0}', space=vmem, size = 0x800, scoped, tag = 'input window, operand 2, single buffered']
    #allocation9 [shape = 'u8[98304]{0}', space=vmem, size = 0x18000, scoped, tag = 'output window, operand 0, single buffered']
    %8 = vsyncpa [#allocation4], 0
    %9 = vsyncpa [#allocation7], 0
    %10 = vsyncpa [#allocation5], 0
    // Predicated region
    $region2: #{tpu_custom_call.1} parent=1 // pred_check
      _
    $region3: #{tpu_custom_call.1} parent=1 // pred_check_branch
      %12 = sbr.rel (0) target = $region5
    $region4: #{tpu_custom_call.1} parent=1 // pred_region
      %14 = vsyncadd [#allocation4], 0
      %s15 = sshll.u32 %s0, 4
      %s16 = int_to_ptr.hbm [resolvable:$true] %s15
      %s17 = sshll.u32 [#allocation3], 4
      %s18 = int_to_ptr.vmem [resolvable:$true] %s17
      %23 = dma.hbm_to_vmem [thread:$0]  %s16, 512, %s18, [#allocation4], 64, 64, 4
    $region5: #{tpu_custom_call.1} parent=1 // pred_fallthru
      _
    // Predicated region
    $region6: #{tpu_custom_call.1} parent=1 // pred_check
      _
    $region7: #{tpu_custom_call.1} parent=1 // pred_check_branch
      %25 = sbr.rel (0) target = $region9
    $region8: #{tpu_custom_call.1} parent=1 // pred_region
      %27 = vsyncadd [#allocation7], 0
      %s28 = sshll.u32 %s1, 4
      %s29 = int_to_ptr.hbm [resolvable:$true] %s28
      %s30 = sshll.u32 [#allocation6], 4
      %s31 = int_to_ptr.vmem [resolvable:$true] %s30
      %36 = dma.hbm_to_vmem [thread:$0]  %s29, 3072, %s31, [#allocation7], 192, 192, 12
    $region9: #{tpu_custom_call.1} parent=1 // pred_fallthru
      _
    // Predicated region
    $region10: #{tpu_custom_call.1} parent=1 // pred_check
      _
    $region11: #{tpu_custom_call.1} parent=1 // pred_check_branch
      %38 = sbr.rel (0) target = $region13
    $region12: #{tpu_custom_call.1} parent=1 // pred_region
      %40 = vsyncadd [#allocation7], 0
      %s42 = sshll.u32 %s2, 4
      %s43 = int_to_ptr.hbm [resolvable:$true] %s42
      %s44 = sshll.u32 [#allocation8], 4
      %s45 = int_to_ptr.vmem [resolvable:$true] %s44
      %47 = dma.hbm_to_vmem [thread:$0]  %s43, 48, %s45, [#allocation7]
    $region13: #{tpu_custom_call.1} parent=1 // pred_fallthru
      _
    // Predicated region
    $region14: #{tpu_custom_call.1} parent=1 // pred_check
      _
    $region15: #{tpu_custom_call.1} parent=1 // pred_check_branch
      %49 = sbr.rel (0) target = $region17
    $region16: #{tpu_custom_call.1} parent=1 // pred_region
      %51 = dma.done [#allocation4], 512
    $region17: #{tpu_custom_call.1} parent=1 // pred_fallthru
      _
    // Predicated region
    $region18: #{tpu_custom_call.1} parent=1 // pred_check
      _
    $region19: #{tpu_custom_call.1} parent=1 // pred_check_branch
      %53 = sbr.rel (0) target = $region21
    $region20: #{tpu_custom_call.1} parent=1 // pred_region
      %55 = dma.done [#allocation7], 3072
    $region21: #{tpu_custom_call.1} parent=1 // pred_fallthru
      _
    // Predicated region
    $region22: #{tpu_custom_call.1} parent=1 // pred_check
      _
    $region23: #{tpu_custom_call.1} parent=1 // pred_check_branch
      %57 = sbr.rel (0) target = $region25
    $region24: #{tpu_custom_call.1} parent=1 // pred_region
      %59 = dma.done [#allocation7], 48
    $region25: #{tpu_custom_call.1} parent=1 // pred_fallthru
      _
    %p60 = scmp.eq.s32.totalorder 0, 0
    // Predicated region
    $region26: #{tpu_custom_call.1} parent=1 // pred_check
      %p61 = pneg %p60
    $region27: #{tpu_custom_call.1} parent=1 // pred_check_branch
      %63 = sbr.rel (%p61) target = $region29
    $region28: #{tpu_custom_call.1} parent=1 // pred_region
      %64 = vst [vmem:[#allocation2] sm:$0xff] 0.0
      %65 = vst [vmem:[#allocation2 + $0x8] sm:$0xff] 0.0
      %66 = vst [vmem:[#allocation2 + $0x10] sm:$0xff] 0.0
      %67 = vst [vmem:[#allocation2 + $0x18] sm:$0xff] 0.0
      %68 = vst [vmem:[#allocation2 + $0x20] sm:$0xff] 0.0
      %69 = vst [vmem:[#allocation2 + $0x28] sm:$0xff] 0.0
      %70 = vst [vmem:[#allocation2 + $0x30] sm:$0xff] 0.0
      %71 = vst [vmem:[#allocation2 + $0x38] sm:$0xff] 0.0
      %72 = vst [vmem:[#allocation2 + $0x40] sm:$0xff] 0.0
      %73 = vst [vmem:[#allocation2 + $0x48] sm:$0xff] 0.0
      %74 = vst [vmem:[#allocation2 + $0x50] sm:$0xff] 0.0
      %75 = vst [vmem:[#allocation2 + $0x58] sm:$0xff] 0.0
      %76 = vst [vmem:[#allocation2 + $0x60] sm:$0xff] 0.0
      %77 = vst [vmem:[#allocation2 + $0x68] sm:$0xff] 0.0
      %78 = vst [vmem:[#allocation2 + $0x70] sm:$0xff] 0.0
      %79 = vst [vmem:[#allocation2 + $0x78] sm:$0xff] 0.0
      %80 = vst [vmem:[#allocation2 + $0x80] sm:$0xff] 0.0
      %81 = vst [vmem:[#allocation2 + $0x88] sm:$0xff] 0.0
      %82 = vst [vmem:[#allocation2 + $0x90] sm:$0xff] 0.0
      %83 = vst [vmem:[#allocation2 + $0x98] sm:$0xff] 0.0
      %84 = vst [vmem:[#allocation2 + $0xa0] sm:$0xff] 0.0
      %85 = vst [vmem:[#allocation2 + $0xa8] sm:$0xff] 0.0
      %86 = vst [vmem:[#allocation2 + $0xb0] sm:$0xff] 0.0
      %87 = vst [vmem:[#allocation2 + $0xb8] sm:$0xff] 0.0
    $region29: #{tpu_custom_call.1} parent=1 // pred_fallthru
      _
    %v88 = vld [vmem:[#allocation2] sm:$0xff]
    %v89 = vld [vmem:[#allocation2 + $0x8] sm:$0xff]
    %v90 = vld [vmem:[#allocation2 + $0x10] sm:$0xff]
    %v91 = vld [vmem:[#allocation2 + $0x18] sm:$0xff]
    %v92 = vld [vmem:[#allocation2 + $0x20] sm:$0xff]
    %v93 = vld [vmem:[#allocation2 + $0x28] sm:$0xff]
    %v94 = vld [vmem:[#allocation2 + $0x30] sm:$0xff]
    %v95 = vld [vmem:[#allocation2 + $0x38] sm:$0xff]
    %v96 = vld [vmem:[#allocation2 + $0x40] sm:$0xff]
    %v97 = vld [vmem:[#allocation2 + $0x48] sm:$0xff]
    %v98 = vld [vmem:[#allocation2 + $0x50] sm:$0xff]
    %v99 = vld [vmem:[#allocation2 + $0x58] sm:$0xff]
    %v100 = vld [vmem:[#allocation2 + $0x60] sm:$0xff]
    %v101 = vld [vmem:[#allocation2 + $0x68] sm:$0xff]
    %v102 = vld [vmem:[#allocation2 + $0x70] sm:$0xff]
    %v103 = vld [vmem:[#allocation2 + $0x78] sm:$0xff]
    %v104 = vld [vmem:[#allocation2 + $0x80] sm:$0xff]
    %v105 = vld [vmem:[#allocation2 + $0x88] sm:$0xff]
    %v106 = vld [vmem:[#allocation2 + $0x90] sm:$0xff]
    %v107 = vld [vmem:[#allocation2 + $0x98] sm:$0xff]
    %v108 = vld [vmem:[#allocation2 + $0xa0] sm:$0xff]
    %v109 = vld [vmem:[#allocation2 + $0xa8] sm:$0xff]
    %v110 = vld [vmem:[#allocation2 + $0xb0] sm:$0xff]
    %v111 = vld [vmem:[#allocation2 + $0xb8] sm:$0xff]
    %v112 = vld [vmem:[#allocation3] sm:$0xf]
    %v113 = vld [vmem:[#allocation3 + $0x4] sm:$0xf]
    %v114 = vld [vmem:[#allocation3 + $0x8] sm:$0xf]
    %v115 = vld [vmem:[#allocation3 + $0xc] sm:$0xf]
    %v116 = vld [vmem:[#allocation3 + $0x10] sm:$0xf]
    %v117 = vld [vmem:[#allocation3 + $0x14] sm:$0xf]
    %v118 = vld [vmem:[#allocation3 + $0x18] sm:$0xf]
    %v119 = vld [vmem:[#allocation3 + $0x1c] sm:$0xf]
    %v120 = vld [vmem:[#allocation6] sm:$0xff]
    %v121 = vld [vmem:[#allocation6 + $0x8] sm:$0xf]
    %v122 = vld [vmem:[#allocation6 + $0xc] sm:$0xff]
    %v123 = vld [vmem:[#allocation6 + $0x14] sm:$0xf]
    %v124 = vld [vmem:[#allocation6 + $0x18] sm:$0xff]
    %v125 = vld [vmem:[#allocation6 + $0x20] sm:$0xf]
    %v126 = vld [vmem:[#allocation6 + $0x24] sm:$0xff]
    %v127 = vld [vmem:[#allocation6 + $0x2c] sm:$0xf]
    %v128 = vld [vmem:[#allocation6 + $0x30] sm:$0xff]
    %v129 = vld [vmem:[#allocation6 + $0x38] sm:$0xf]
    %v130 = vld [vmem:[#allocation6 + $0x3c] sm:$0xff]
    %v131 = vld [vmem:[#allocation6 + $0x44] sm:$0xf]
    %v132 = vld [vmem:[#allocation6 + $0x48] sm:$0xff]
    %v133 = vld [vmem:[#allocation6 + $0x50] sm:$0xf]
    %v134 = vld [vmem:[#allocation6 + $0x54] sm:$0xff]
    %v135 = vld [vmem:[#allocation6 + $0x5c] sm:$0xf]
    %v136 = vld [vmem:[#allocation6 + $0x60] sm:$0xff]
    %v137 = vld [vmem:[#allocation6 + $0x68] sm:$0xf]
    %v138 = vld [vmem:[#allocation6 + $0x6c] sm:$0xff]
    %v139 = vld [vmem:[#allocation6 + $0x74] sm:$0xf]
    %v140 = vld [vmem:[#allocation6 + $0x78] sm:$0xff]
    %v141 = vld [vmem:[#allocation6 + $0x80] sm:$0xf]
    %v142 = vld [vmem:[#allocation6 + $0x84] sm:$0xff]
    %v143 = vld [vmem:[#allocation6 + $0x8c] sm:$0xf]
    %v144 = vld [vmem:[#allocation6 + $0x90] sm:$0xff]
    %v145 = vld [vmem:[#allocation6 + $0x98] sm:$0xf]
    %v146 = vld [vmem:[#allocation6 + $0x9c] sm:$0xff]
    %v147 = vld [vmem:[#allocation6 + $0xa4] sm:$0xf]
    %v148 = vld [vmem:[#allocation6 + $0xa8] sm:$0xff]
    %v149 = vld [vmem:[#allocation6 + $0xb0] sm:$0xf]
    %v150 = vld [vmem:[#allocation6 + $0xb4] sm:$0xff]
    %v151 = vld [vmem:[#allocation6 + $0xbc] sm:$0xf]
    %v160 = vunpack.c.l.b16 %v112
    %v161 = vunpack.c.l.b16 %v113
    %v162 = vunpack.c.l.b16 %v114
    %v163 = vunpack.c.l.b16 %v115
    %v164 = vunpack.c.l.b16 %v116
    %v165 = vunpack.c.l.b16 %v117
    %v166 = vunpack.c.l.b16 %v118
    %v167 = vunpack.c.l.b16 %v119
    %v168 = vpack.c.b16 %v161, %v160
    %v169 = vpack.c.b16 %v163, %v162
    %v170 = vpack.c.b16 %v165, %v164
    %v171 = vpack.c.b16 %v167, %v166
    %v208 = vunpack.c.l.b16 %v120
    %v209 = vunpack.c.h.b16 %v120
    %v210 = vunpack.c.l.b16 %v121
    %v211 = vunpack.c.l.b16 %v122
    %v212 = vunpack.c.h.b16 %v122
    %v213 = vunpack.c.l.b16 %v123
    %v214 = vunpack.c.l.b16 %v124
    %v215 = vunpack.c.h.b16 %v124
    %v216 = vunpack.c.l.b16 %v125
    %v217 = vunpack.c.l.b16 %v126
    %v218 = vunpack.c.h.b16 %v126
    %v219 = vunpack.c.l.b16 %v127
    %v220 = vunpack.c.l.b16 %v128
    %v221 = vunpack.c.h.b16 %v128
    %v222 = vunpack.c.l.b16 %v129
    %v223 = vunpack.c.l.b16 %v130
    %v224 = vunpack.c.h.b16 %v130
    %v225 = vunpack.c.l.b16 %v131
    %v226 = vunpack.c.l.b16 %v132
    %v227 = vunpack.c.h.b16 %v132
    %v228 = vunpack.c.l.b16 %v133
    %v229 = vunpack.c.l.b16 %v134
    %v230 = vunpack.c.h.b16 %v134
    %v231 = vunpack.c.l.b16 %v135
    %v232 = vunpack.c.l.b16 %v136
    %v233 = vunpack.c.h.b16 %v136
    %v234 = vunpack.c.l.b16 %v137
    %v235 = vunpack.c.l.b16 %v138
    %v236 = vunpack.c.h.b16 %v138
    %v237 = vunpack.c.l.b16 %v139
    %v238 = vunpack.c.l.b16 %v140
    %v239 = vunpack.c.h.b16 %v140
    %v240 = vunpack.c.l.b16 %v141
    %v241 = vunpack.c.l.b16 %v142
    %v242 = vunpack.c.h.b16 %v142
    %v243 = vunpack.c.l.b16 %v143
    %v244 = vunpack.c.l.b16 %v144
    %v245 = vunpack.c.h.b16 %v144
    %v246 = vunpack.c.l.b16 %v145
    %v247 = vunpack.c.l.b16 %v146
    %v248 = vunpack.c.h.b16 %v146
    %v249 = vunpack.c.l.b16 %v147
    %v250 = vunpack.c.l.b16 %v148
    %v251 = vunpack.c.h.b16 %v148
    %v252 = vunpack.c.l.b16 %v149
    %v253 = vunpack.c.l.b16 %v150
    %v254 = vunpack.c.h.b16 %v150
    %v255 = vunpack.c.l.b16 %v151
    %v256 = vpack.c.b16 %v211, %v208
    %v257 = vpack.c.b16 %v212, %v209
    %v258 = vpack.c.b16 %v213, %v210
    %v259 = vpack.c.b16 %v217, %v214
    %v260 = vpack.c.b16 %v218, %v215
    %v261 = vpack.c.b16 %v219, %v216
    %v262 = vpack.c.b16 %v223, %v220
    %v263 = vpack.c.b16 %v224, %v221
    %v264 = vpack.c.b16 %v225, %v222
    %v265 = vpack.c.b16 %v229, %v226
    %v266 = vpack.c.b16 %v230, %v227
    %v267 = vpack.c.b16 %v231, %v228
    %v268 = vpack.c.b16 %v235, %v232
    %v269 = vpack.c.b16 %v236, %v233
    %v270 = vpack.c.b16 %v237, %v234
    %v271 = vpack.c.b16 %v241, %v238
    %v272 = vpack.c.b16 %v242, %v239
    %v273 = vpack.c.b16 %v243, %v240
    %v274 = vpack.c.b16 %v247, %v244
    %v275 = vpack.c.b16 %v248, %v245
    %v276 = vpack.c.b16 %v249, %v246
    %v277 = vpack.c.b16 %v253, %v250
    %v278 = vpack.c.b16 %v254, %v251
    %v279 = vpack.c.b16 %v255, %v252
    %304 = vmatpush.bf16.msra.mxu0 %v277
    %305 = vmatpush.bf16.msra.mxu0 %v274
    %306 = vmatpush.bf16.msra.mxu0 %v271
    %307 = vmatpush.bf16.msra.mxu0 %v268
    %308 = vmatpush.bf16.msra.mxu0 %v265
    %309 = vmatpush.bf16.msra.mxu0 %v262
    %310 = vmatpush.bf16.msra.mxu0 %v259
    %311 = vmatpush.bf16.msra.mxu0 %v256
    %312 = vmatmul.bf16.gmra.mxu0 %v168
    %v313 = vpop.f32.mrf.mxu0
    %v314 = vadd.f32 0.0, %v313
    %v315 = vpop.f32.mrf.mxu0
    %v316 = vadd.f32 0.0, %v315
    %317 = vmatmul.bf16.gmra.mxu0 %v169
    %v318 = vpop.f32.mrf.mxu0
    %v319 = vadd.f32 0.0, %v318
    %v320 = vpop.f32.mrf.mxu0
    %v321 = vadd.f32 0.0, %v320
    %322 = vmatmul.bf16.gmra.mxu0 %v170
    %v323 = vpop.f32.mrf.mxu0
    %v324 = vadd.f32 0.0, %v323
    %v325 = vpop.f32.mrf.mxu0
    %v326 = vadd.f32 0.0, %v325
    %327 = vmatmul.bf16.gmra.mxu0 %v171
    %v328 = vpop.f32.mrf.mxu0
    %v329 = vadd.f32 0.0, %v328
    %v330 = vpop.f32.mrf.mxu0
    %v331 = vadd.f32 0.0, %v330
    %332 = vdwg.mxu0
    %333 = vmatpush.bf16.msra.mxu0 %v278
    %334 = vmatpush.bf16.msra.mxu0 %v275
    %335 = vmatpush.bf16.msra.mxu0 %v272
    %336 = vmatpush.bf16.msra.mxu0 %v269
    %337 = vmatpush.bf16.msra.mxu0 %v266
    %338 = vmatpush.bf16.msra.mxu0 %v263
    %339 = vmatpush.bf16.msra.mxu0 %v260
    %340 = vmatpush.bf16.msra.mxu0 %v257
    %341 = vmatmul.bf16.gmra.mxu0 %v168
    %v342 = vpop.f32.mrf.mxu0
    %v343 = vadd.f32 0.0, %v342
    %v344 = vpop.f32.mrf.mxu0
    %v345 = vadd.f32 0.0, %v344
    %346 = vmatmul.bf16.gmra.mxu0 %v169
    %v347 = vpop.f32.mrf.mxu0
    %v348 = vadd.f32 0.0, %v347
    %v349 = vpop.f32.mrf.mxu0
    %v350 = vadd.f32 0.0, %v349
    %351 = vmatmul.bf16.gmra.mxu0 %v170
    %v352 = vpop.f32.mrf.mxu0
    %v353 = vadd.f32 0.0, %v352
    %v354 = vpop.f32.mrf.mxu0
    %v355 = vadd.f32 0.0, %v354
    %356 = vmatmul.bf16.gmra.mxu0 %v171
    %v357 = vpop.f32.mrf.mxu0
    %v358 = vadd.f32 0.0, %v357
    %v359 = vpop.f32.mrf.mxu0
    %v360 = vadd.f32 0.0, %v359
    %361 = vdwg.mxu0
    %362 = vmatpush.bf16.msra.mxu0 %v279
    %363 = vmatpush.bf16.msra.mxu0 %v276
    %364 = vmatpush.bf16.msra.mxu0 %v273
    %365 = vmatpush.bf16.msra.mxu0 %v270
    %366 = vmatpush.bf16.msra.mxu0 %v267
    %367 = vmatpush.bf16.msra.mxu0 %v264
    %368 = vmatpush.bf16.msra.mxu0 %v261
    %369 = vmatpush.bf16.msra.mxu0 %v258
    %370 = vmatmul.bf16.gmra.mxu0 %v168
    %v371 = vpop.f32.mrf.mxu0
    %v372 = vadd.f32 0.0, %v371
    %v373 = vpop.f32.mrf.mxu0
    %v374 = vadd.f32 0.0, %v373
    %375 = vmatmul.bf16.gmra.mxu0 %v169
    %v376 = vpop.f32.mrf.mxu0
    %v377 = vadd.f32 0.0, %v376
    %v378 = vpop.f32.mrf.mxu0
    %v379 = vadd.f32 0.0, %v378
    %380 = vmatmul.bf16.gmra.mxu0 %v170
    %v381 = vpop.f32.mrf.mxu0
    %v382 = vadd.f32 0.0, %v381
    %v383 = vpop.f32.mrf.mxu0
    %v384 = vadd.f32 0.0, %v383
    %385 = vmatmul.bf16.gmra.mxu0 %v171
    %v386 = vpop.f32.mrf.mxu0
    %v387 = vadd.f32 0.0, %v386
    %v388 = vpop.f32.mrf.mxu0
    %v389 = vadd.f32 0.0, %v388
    %390 = vdwg.mxu0
    %v391 = vadd.f32 %v88, %v314
    %v392 = vadd.f32 %v89, %v343
    %v393 = vadd.f32 %v90, %v372
    %v394 = vadd.f32 %v91, %v316
    %v395 = vadd.f32 %v92, %v345
    %v396 = vadd.f32 %v93, %v374
    %v397 = vadd.f32 %v94, %v319
    %v398 = vadd.f32 %v95, %v348
    %v399 = vadd.f32 %v96, %v377
    %v400 = vadd.f32 %v97, %v321
    %v401 = vadd.f32 %v98, %v350
    %v402 = vadd.f32 %v99, %v379
    %v403 = vadd.f32 %v100, %v324
    %v404 = vadd.f32 %v101, %v353
    %v405 = vadd.f32 %v102, %v382
    %v406 = vadd.f32 %v103, %v326
    %v407 = vadd.f32 %v104, %v355
    %v408 = vadd.f32 %v105, %v384
    %v409 = vadd.f32 %v106, %v329
    %v410 = vadd.f32 %v107, %v358
    %v411 = vadd.f32 %v108, %v387
    %v412 = vadd.f32 %v109, %v331
    %v413 = vadd.f32 %v110, %v360
    %v414 = vadd.f32 %v111, %v389
    %415 = vst [vmem:[#allocation2] sm:$0xff] %v391
    %416 = vst [vmem:[#allocation2 + $0x8] sm:$0xff] %v392
    %417 = vst [vmem:[#allocation2 + $0x10] sm:$0xff] %v393
    %418 = vst [vmem:[#allocation2 + $0x18] sm:$0xff] %v394
    %419 = vst [vmem:[#allocation2 + $0x20] sm:$0xff] %v395
    %420 = vst [vmem:[#allocation2 + $0x28] sm:$0xff] %v396
    %421 = vst [vmem:[#allocation2 + $0x30] sm:$0xff] %v397
    %422 = vst [vmem:[#allocation2 + $0x38] sm:$0xff] %v398
    %423 = vst [vmem:[#allocation2 + $0x40] sm:$0xff] %v399
    %424 = vst [vmem:[#allocation2 + $0x48] sm:$0xff] %v400
    %425 = vst [vmem:[#allocation2 + $0x50] sm:$0xff] %v401
    %426 = vst [vmem:[#allocation2 + $0x58] sm:$0xff] %v402
    %427 = vst [vmem:[#allocation2 + $0x60] sm:$0xff] %v403
    %428 = vst [vmem:[#allocation2 + $0x68] sm:$0xff] %v404
    %429 = vst [vmem:[#allocation2 + $0x70] sm:$0xff] %v405
    %430 = vst [vmem:[#allocation2 + $0x78] sm:$0xff] %v406
    %431 = vst [vmem:[#allocation2 + $0x80] sm:$0xff] %v407
    %432 = vst [vmem:[#allocation2 + $0x88] sm:$0xff] %v408
    %433 = vst [vmem:[#allocation2 + $0x90] sm:$0xff] %v409
    %434 = vst [vmem:[#allocation2 + $0x98] sm:$0xff] %v410
    %435 = vst [vmem:[#allocation2 + $0xa0] sm:$0xff] %v411
    %436 = vst [vmem:[#allocation2 + $0xa8] sm:$0xff] %v412
    %437 = vst [vmem:[#allocation2 + $0xb0] sm:$0xff] %v413
    %438 = vst [vmem:[#allocation2 + $0xb8] sm:$0xff] %v414
    // Predicated region
    $region30: #{tpu_custom_call.1} parent=1 // pred_check
      %p439 = pneg %p60
    $region31: #{tpu_custom_call.1} parent=1 // pred_check_branch
      %441 = sbr.rel (%p439) target = $region33
    $region32: #{tpu_custom_call.1} parent=1 // pred_region
      %v442 = vld [vmem:[#allocation2] sm:$0xff]
      %v443 = vld [vmem:[#allocation2 + $0x8] sm:$0xff]
      %v444 = vld [vmem:[#allocation2 + $0x10] sm:$0xff]
      %v445 = vld [vmem:[#allocation2 + $0x18] sm:$0xff]
      %v446 = vld [vmem:[#allocation2 + $0x20] sm:$0xff]
      %v447 = vld [vmem:[#allocation2 + $0x28] sm:$0xff]
      %v448 = vld [vmem:[#allocation2 + $0x30] sm:$0xff]
      %v449 = vld [vmem:[#allocation2 + $0x38] sm:$0xff]
      %v450 = vld [vmem:[#allocation2 + $0x40] sm:$0xff]
      %v451 = vld [vmem:[#allocation2 + $0x48] sm:$0xff]
      %v452 = vld [vmem:[#allocation2 + $0x50] sm:$0xff]
      %v453 = vld [vmem:[#allocation2 + $0x58] sm:$0xff]
      %v454 = vld [vmem:[#allocation2 + $0x60] sm:$0xff]
      %v455 = vld [vmem:[#allocation2 + $0x68] sm:$0xff]
      %v456 = vld [vmem:[#allocation2 + $0x70] sm:$0xff]
      %v457 = vld [vmem:[#allocation2 + $0x78] sm:$0xff]
      %v458 = vld [vmem:[#allocation2 + $0x80] sm:$0xff]
      %v459 = vld [vmem:[#allocation2 + $0x88] sm:$0xff]
      %v460 = vld [vmem:[#allocation2 + $0x90] sm:$0xff]
      %v461 = vld [vmem:[#allocation2 + $0x98] sm:$0xff]
      %v462 = vld [vmem:[#allocation2 + $0xa0] sm:$0xff]
      %v463 = vld [vmem:[#allocation2 + $0xa8] sm:$0xff]
      %v464 = vld [vmem:[#allocation2 + $0xb0] sm:$0xff]
      %v465 = vld [vmem:[#allocation2 + $0xb8] sm:$0xff]
      %v466 = vld [vmem:[#allocation8] sm:$0x7]
      %v468 = vperm.slane %v466, 0
      %v469 = vperm.slane %v466, 1
      %v470 = vperm.slane %v466, 2
      %v474 = vadd.f32 %v442, %v468
      %v475 = vadd.f32 %v443, %v469
      %v476 = vadd.f32 %v444, %v470
      %v477 = vadd.f32 %v445, %v468
      %v478 = vadd.f32 %v446, %v469
      %v479 = vadd.f32 %v447, %v470
      %v480 = vadd.f32 %v448, %v468
      %v481 = vadd.f32 %v449, %v469
      %v482 = vadd.f32 %v450, %v470
      %v483 = vadd.f32 %v451, %v468
      %v484 = vadd.f32 %v452, %v469
      %v485 = vadd.f32 %v453, %v470
      %v486 = vadd.f32 %v454, %v468
      %v487 = vadd.f32 %v455, %v469
      %v488 = vadd.f32 %v456, %v470
      %v489 = vadd.f32 %v457, %v468
      %v490 = vadd.f32 %v458, %v469
      %v491 = vadd.f32 %v459, %v470
      %v492 = vadd.f32 %v460, %v468
      %v493 = vadd.f32 %v461, %v469
      %v494 = vadd.f32 %v462, %v470
      %v495 = vadd.f32 %v463, %v468
      %v496 = vadd.f32 %v464, %v469
      %v497 = vadd.f32 %v465, %v470
      %498 = vst [vmem:[#allocation9] sm:$0xff] %v474
      %499 = vst [vmem:[#allocation9 + $0x8] sm:$0xff] %v475
      %500 = vst [vmem:[#allocation9 + $0x10] sm:$0xff] %v476
      %501 = vst [vmem:[#allocation9 + $0x18] sm:$0xff] %v477
      %502 = vst [vmem:[#allocation9 + $0x20] sm:$0xff] %v478
      %503 = vst [vmem:[#allocation9 + $0x28] sm:$0xff] %v479
      %504 = vst [vmem:[#allocation9 + $0x30] sm:$0xff] %v480
      %505 = vst [vmem:[#allocation9 + $0x38] sm:$0xff] %v481
      %506 = vst [vmem:[#allocation9 + $0x40] sm:$0xff] %v482
      %507 = vst [vmem:[#allocation9 + $0x48] sm:$0xff] %v483
      %508 = vst [vmem:[#allocation9 + $0x50] sm:$0xff] %v484
      %509 = vst [vmem:[#allocation9 + $0x58] sm:$0xff] %v485
      %510 = vst [vmem:[#allocation9 + $0x60] sm:$0xff] %v486
      %511 = vst [vmem:[#allocation9 + $0x68] sm:$0xff] %v487
      %512 = vst [vmem:[#allocation9 + $0x70] sm:$0xff] %v488
      %513 = vst [vmem:[#allocation9 + $0x78] sm:$0xff] %v489
      %514 = vst [vmem:[#allocation9 + $0x80] sm:$0xff] %v490
      %515 = vst [vmem:[#allocation9 + $0x88] sm:$0xff] %v491
      %516 = vst [vmem:[#allocation9 + $0x90] sm:$0xff] %v492
      %517 = vst [vmem:[#allocation9 + $0x98] sm:$0xff] %v493
      %518 = vst [vmem:[#allocation9 + $0xa0] sm:$0xff] %v494
      %519 = vst [vmem:[#allocation9 + $0xa8] sm:$0xff] %v495
      %520 = vst [vmem:[#allocation9 + $0xb0] sm:$0xff] %v496
      %521 = vst [vmem:[#allocation9 + $0xb8] sm:$0xff] %v497
    $region33: #{tpu_custom_call.1} parent=1 // pred_fallthru
      _
    // Predicated region
    $region34: #{tpu_custom_call.1} parent=1 // pred_check
      _
    $region35: #{tpu_custom_call.1} parent=1 // pred_check_branch
      %523 = sbr.rel (0) target = $region37
    $region36: #{tpu_custom_call.1} parent=1 // pred_region
      %525 = vsyncadd [#allocation5], 0
      %s526 = sshll.u32 [#allocation9], 4
      %s527 = int_to_ptr.vmem [resolvable:$true] %s526
      %s528 = sshll.u32 %s3, 4
      %s529 = int_to_ptr.hbm [resolvable:$true] %s528
      %534 = dma.vmem_to_hbm [thread:$0]  %s527, 3072, %s529, [#allocation5], 384, 384, 24
    $region37: #{tpu_custom_call.1} parent=1 // pred_fallthru
      _
    // Predicated region
    $region38: #{tpu_custom_call.1} parent=1 // pred_check
      _
    $region39: #{tpu_custom_call.1} parent=1 // pred_check_branch
      %536 = sbr.rel (0) target = $region41
    $region40: #{tpu_custom_call.1} parent=1 // pred_region
      %538 = dma.done [#allocation5], 3072
    $region41: #{tpu_custom_call.1} parent=1 // pred_fallthru
      _
    %539 = vsyncpa [#allocation4], 1
    %540 = vsyncpa [#allocation7], 1
    %541 = vsyncpa [#allocation5], 1

</llo_original>
